<compile_context>
chip_gen: v7x
topology: tpu7x:2x2x1
jax: 0.10.0
libtpu: 0.0.40
codegen_flags: <defaults>
</compile_context>

<pallas_src>
import math

import jax
import jax.numpy as jnp
from jax.experimental import pallas as pl
from jax.experimental.pallas import tpu as pltpu


def _round_up(v, m):
    return ((v + m - 1) // m) * m


def _stochastic_linear_kernel(x_ref, wmu_ref, wvar_ref, bmu_ref, bvar_ref,
                              noise_ref, o_ref):
    x = x_ref[...]                                            # (tm, K)
    # Mean path: MXU matmul, f32 accumulation.
    out_mean = jnp.dot(x, wmu_ref[...],
                       preferred_element_type=jnp.float32) + bmu_ref[...]
    # Variance path: (x^2) @ exp(w_log_var).T (exp + transpose pre-done in wrapper).
    out_var = jnp.dot(x * x, wvar_ref[...],
                      preferred_element_type=jnp.float32) + bvar_ref[...]
    out_var = jnp.maximum(out_var, 0.0)                       # relu
    o_ref[...] = out_mean + noise_ref[...] * jnp.sqrt(out_var)


def stochastic_linear(x, w_mu, w_log_var, b_mu, b_log_var, noise,
                      *, tm=None, tn=None):
    """x: (B, in_dim) f32; w_*: (out_dim, in_dim) as in nn.Linear;
    b_*: (out_dim,); noise: (B, out_dim) pre-scaled by eps_std.
    Returns (B, out_dim) f32."""
    B, in_dim = x.shape
    out_dim = w_mu.shape[0]

    # --- one-time glue, hoisted out of the per-tile hot path --------------
    w_mu_t = w_mu.T                                   # (in_dim, out_dim)
    w_var_t = jnp.exp(w_log_var).T                    # (in_dim, out_dim)
    b_mu2 = b_mu.reshape(1, out_dim)
    b_var2 = jnp.exp(b_log_var).reshape(1, out_dim)

    # --- tile sizes --------------------------------------------------------
    if tm is None:
        tm = min(256, _round_up(B, 8))                # fill MXU rows, amortize steps
    if tn is None:
        n128 = _round_up(out_dim, 128)                # lane-dense output
        tn = 512 if n128 % 512 == 0 else (256 if n128 % 256 == 0 else 128)
    m_pad = _round_up(B, tm)
    n_pad = _round_up(out_dim, tn)

    # --- zero-pad to tile boundaries (padded rows/cols sliced off below) ---
    x_p = jnp.pad(x, ((0, m_pad - B), (0, 0)))
    noise_p = jnp.pad(noise, ((0, m_pad - B), (0, n_pad - out_dim)))
    w_mu_p = jnp.pad(w_mu_t, ((0, 0), (0, n_pad - out_dim)))
    w_var_p = jnp.pad(w_var_t, ((0, 0), (0, n_pad - out_dim)))
    b_mu_p = jnp.pad(b_mu2, ((0, 0), (0, n_pad - out_dim)))
    b_var_p = jnp.pad(b_var2, ((0, 0), (0, n_pad - out_dim)))

    grid = (m_pad // tm, n_pad // tn)

    out_p = pl.pallas_call(
        _stochastic_linear_kernel,
        out_shape=jax.ShapeDtypeStruct((m_pad, n_pad), jnp.float32),
        grid_spec=pltpu.PrefetchScalarGridSpec(
            num_scalar_prefetch=0,
            grid=grid,
            in_specs=[
                pl.BlockSpec((tm, in_dim), lambda i, j: (i, 0)),   # x tile
                pl.BlockSpec((in_dim, tn), lambda i, j: (0, j)),   # w_mu^T tile
                pl.BlockSpec((in_dim, tn), lambda i, j: (0, j)),   # exp(w_log_var)^T tile
                pl.BlockSpec((1, tn), lambda i, j: (0, j)),        # b_mu
                pl.BlockSpec((1, tn), lambda i, j: (0, j)),        # exp(b_log_var)
                pl.BlockSpec((tm, tn), lambda i, j: (i, j)),       # noise tile
            ],
            out_specs=pl.BlockSpec((tm, tn), lambda i, j: (i, j)),
        ),
        compiler_params=pltpu.CompilerParams(
            dimension_semantics=("parallel", "parallel"),
            # Above the 16/32 MiB default scoped limit so medium-size weight
            # tiles stay resident; kept <= v7x's 64 MiB physical VMEM.
            vmem_limit_bytes=64 * 1024 * 1024,
        ),
    )(x_p, w_mu_p, w_var_p, b_mu_p, b_var_p, noise_p)

    return out_p[:B, :out_dim]


def init_params(key, in_dim, out_dim, log_var_init=None):
    """Deterministic param init mirroring init_stochastic_linear."""
    if log_var_init is None:
        log_var_init = {"mean": -10.0, "std": 0.1}
    k1, k2, k3, k4 = jax.random.split(key, 4)
    stdv = math.sqrt(1.0 / in_dim)
    w_mu = jax.random.uniform(k1, (out_dim, in_dim), jnp.float32, -stdv, stdv)
    w_log_var = (log_var_init["mean"]
                 + log_var_init["std"] * jax.random.normal(k2, (out_dim, in_dim),
                                                           jnp.float32))
    b_mu = jax.random.uniform(k3, (out_dim,), jnp.float32, -stdv, stdv)
    b_log_var = (log_var_init["mean"]
                 + log_var_init["std"] * jax.random.normal(k4, (out_dim,),
                                                           jnp.float32))
    return w_mu, w_log_var, b_mu, b_log_var


def reference(x, w_mu, w_log_var, b_mu, b_log_var, noise):
    out_mean = x @ w_mu.T + b_mu
    out_var = (x ** 2) @ jnp.exp(w_log_var).T + jnp.exp(b_log_var)
    out_var = jnp.maximum(out_var, 0.0)
    return out_mean + noise * jnp.sqrt(out_var)


if __name__ == "__main__":
    B, in_dim, out_dim = 16, 32, 16
    eps_std = 1.0

    key = jax.random.PRNGKey(0)
    kx, kn, kp = jax.random.split(key, 3)

    x = jax.random.normal(kx, (B, in_dim), jnp.float32)
    w_mu, w_log_var, b_mu, b_log_var = init_params(kp, in_dim, out_dim)
    # noise ~ N(0, eps_std): generated outside the kernel (glue) so the run is
    # deterministic / reproducible against the reference.
    noise = eps_std * jax.random.normal(kn, (B, out_dim), jnp.float32)

    out = stochastic_linear(x, w_mu, w_log_var, b_mu, b_log_var, noise)
    out = jax.block_until_ready(out)

    ref = reference(x, w_mu, w_log_var, b_mu, b_log_var, noise)
    assert out.shape == (B, out_dim)
    assert jnp.allclose(out, ref, atol=1e-5, rtol=1e-5), "mismatch vs reference"

    print("KERNEL_OK")
</pallas_src>

<mosaic_0001>
module attributes {stable_mosaic.version = 11 : i64} {
  func.func @_stochastic_linear_kernel(%arg0: i32, %arg1: i32, %arg2: memref<16x32xf32, #tpu.memory_space<vmem>>, %arg3: memref<32x128xf32, #tpu.memory_space<vmem>>, %arg4: memref<32x128xf32, #tpu.memory_space<vmem>>, %arg5: memref<1x128xf32, #tpu.memory_space<vmem>>, %arg6: memref<1x128xf32, #tpu.memory_space<vmem>>, %arg7: memref<16x128xf32, #tpu.memory_space<vmem>>, %arg8: memref<16x128xf32, #tpu.memory_space<vmem>>) attributes {dimension_semantics = [#tpu.dimension_semantics<parallel>, #tpu.dimension_semantics<parallel>], iteration_bounds = array<i64: 1, 1>, scalar_prefetch = 0 : i64, scratch_operands = 0 : i64, tpu.core_type = #tpu.core_type<tc>, window_params = [{transform_indices = @transform_0, window_bounds = array<i64: 16, 32>}, {transform_indices = @transform_1, window_bounds = array<i64: 32, 128>}, {transform_indices = @transform_2, window_bounds = array<i64: 32, 128>}, {transform_indices = @transform_3, window_bounds = array<i64: 1, 128>}, {transform_indices = @transform_4, window_bounds = array<i64: 1, 128>}, {transform_indices = @transform_5, window_bounds = array<i64: 16, 128>}, {transform_indices = @transform_6, window_bounds = array<i64: 16, 128>}]} {
    %c0 = arith.constant 0 : index
    %c0_0 = arith.constant 0 : index
    %0 = vector.load %arg2[%c0, %c0_0] : memref<16x32xf32, #tpu.memory_space<vmem>>, vector<16x32xf32>
    %c0_1 = arith.constant 0 : index
    %c0_2 = arith.constant 0 : index
    %1 = vector.load %arg3[%c0_1, %c0_2] : memref<32x128xf32, #tpu.memory_space<vmem>>, vector<32x128xf32>
    %cst = arith.constant dense<0.000000e+00> : vector<16x128xf32>
    %2 = tpu.matmul %0, %1, %cst {dimension_numbers = #tpu.dot_dimension_numbers<[1], [0], [0], [1], [0, 0, 1, 1], [], []>} : vector<16x32xf32>, vector<32x128xf32>, vector<16x128xf32> -> vector<16x128xf32>
    %c0_3 = arith.constant 0 : index
    %c0_4 = arith.constant 0 : index
    %3 = vector.load %arg5[%c0_3, %c0_4] : memref<1x128xf32, #tpu.memory_space<vmem>>, vector<1x128xf32>
    %4 = vector.broadcast %3 : vector<1x128xf32> to vector<16x128xf32>
    %5 = arith.addf %2, %4 : vector<16x128xf32>
    %6 = arith.mulf %0, %0 : vector<16x32xf32>
    %c0_5 = arith.constant 0 : index
    %c0_6 = arith.constant 0 : index
    %7 = vector.load %arg4[%c0_5, %c0_6] : memref<32x128xf32, #tpu.memory_space<vmem>>, vector<32x128xf32>
    %cst_7 = arith.constant dense<0.000000e+00> : vector<16x128xf32>
    %8 = tpu.matmul %6, %7, %cst_7 {dimension_numbers = #tpu.dot_dimension_numbers<[1], [0], [0], [1], [0, 0, 1, 1], [], []>} : vector<16x32xf32>, vector<32x128xf32>, vector<16x128xf32> -> vector<16x128xf32>
    %c0_8 = arith.constant 0 : index
    %c0_9 = arith.constant 0 : index
    %9 = vector.load %arg6[%c0_8, %c0_9] : memref<1x128xf32, #tpu.memory_space<vmem>>, vector<1x128xf32>
    %10 = vector.broadcast %9 : vector<1x128xf32> to vector<16x128xf32>
    %11 = arith.addf %8, %10 : vector<16x128xf32>
    %cst_10 = arith.constant 0.000000e+00 : f32
    %12 = vector.broadcast %cst_10 : f32 to vector<16x128xf32>
    %13 = arith.maximumf %11, %12 : vector<16x128xf32>
    %c0_11 = arith.constant 0 : index
    %c0_12 = arith.constant 0 : index
    %14 = vector.load %arg7[%c0_11, %c0_12] : memref<16x128xf32, #tpu.memory_space<vmem>>, vector<16x128xf32>
    %15 = math.sqrt %13 : vector<16x128xf32>
    %16 = arith.mulf %14, %15 : vector<16x128xf32>
    %17 = arith.addf %5, %16 : vector<16x128xf32>
    %c0_13 = arith.constant 0 : index
    %c0_14 = arith.constant 0 : index
    %18 = vector.load %arg8[%c0_13, %c0_14] : memref<16x128xf32, #tpu.memory_space<vmem>>, vector<16x128xf32>
    tpu.vector_store %arg8[%c0_13, %c0_14], %17 {strides = array<i32>} : memref<16x128xf32, #tpu.memory_space<vmem>>, vector<16x128xf32>,
    return
  }
  func.func @transform_0(%arg0: i32, %arg1: i32) -> (i32, i32) {
    %c0_i32 = arith.constant 0 : i32
    %c0_i32_0 = arith.constant 0 : i32
    return %arg0, %c0_i32 : i32, i32
  }
  func.func @transform_1(%arg0: i32, %arg1: i32) -> (i32, i32) {
    %c0_i32 = arith.constant 0 : i32
    %c0_i32_0 = arith.constant 0 : i32
    return %c0_i32, %arg1 : i32, i32
  }
  func.func @transform_2(%arg0: i32, %arg1: i32) -> (i32, i32) {
    %c0_i32 = arith.constant 0 : i32
    %c0_i32_0 = arith.constant 0 : i32
    return %c0_i32, %arg1 : i32, i32
  }
  func.func @transform_3(%arg0: i32, %arg1: i32) -> (i32, i32) {
    %c0_i32 = arith.constant 0 : i32
    %c0_i32_0 = arith.constant 0 : i32
    return %c0_i32, %arg1 : i32, i32
  }
  func.func @transform_4(%arg0: i32, %arg1: i32) -> (i32, i32) {
    %c0_i32 = arith.constant 0 : i32
    %c0_i32_0 = arith.constant 0 : i32
    return %c0_i32, %arg1 : i32, i32
  }
  func.func @transform_5(%arg0: i32, %arg1: i32) -> (i32, i32) {
    %c0_i32 = arith.constant 0 : i32
    return %arg0, %arg1 : i32, i32
  }
  func.func @transform_6(%arg0: i32, %arg1: i32) -> (i32, i32) {
    %c0_i32 = arith.constant 0 : i32
    return %arg0, %arg1 : i32, i32
  }
}

</mosaic_0001>

<llo_original>
// kernel: tpu_custom_call.1
$region0: #{tpu_custom_call.1}
  #allocation0 [shape = 'u32[]', space=smem, size = 0x4, offset = 0x4, fixed_abs, tag = 'smem constant byte address 0x4 - core index']
  #allocation1 [shape = 'u32[144,128]{1,0:T(1,128)}', space=vmem, size = 0x12000, scoped, tag = 'internal scratch']
  %s0 = inlined_call_operand.hbm [shape: f32[16,32], index: 0, kind: input, shape index: {}]
  %s1 = inlined_call_operand.hbm [shape: f32[32,128], index: 1, kind: input, shape index: {}]
  %s2 = inlined_call_operand.hbm [shape: f32[32,128], index: 2, kind: input, shape index: {}]
  %s3 = inlined_call_operand.hbm [shape: f32[1,128], index: 3, kind: input, shape index: {}]
  %s4 = inlined_call_operand.hbm [shape: f32[1,128], index: 4, kind: input, shape index: {}]
  %s5 = inlined_call_operand.hbm [shape: f32[16,128], index: 5, kind: input, shape index: {}]
  %s6 = inlined_call_operand.hbm [shape: f32[16,128], index: 6, kind: output, shape index: {}]
  %s7 = sld [smem:[#allocation0]]
  $region58: #{tpu_custom_call.1} parent=0
    _
  %s9 = ssub.s32 1, %s7
  %s10 = scalar_select 0, %s9, %s7
  $region1: #{tpu_custom_call.1} parent=0
    #allocation2 [shape = 'u8[8192]{0}', space=vmem, size = 0x2000, scoped, tag = 'input window, operand 0, single buffered']
    #allocation3 [shape = 's32[1]{0}', space=sflag, size = 0x4, scoped, tag = 'scoped memory for tpu_custom_call.1']
    #allocation4 [shape = 's32[1]{0}', space=sflag, size = 0x4, scoped, tag = 'scoped memory for tpu_custom_call.1']
    #allocation5 [shape = 'u8[16384]{0}', space=vmem, size = 0x4000, scoped, tag = 'input window, operand 1, single buffered']
    #allocation6 [shape = 's32[1]{0}', space=sflag, size = 0x4, scoped, tag = 'scoped memory for tpu_custom_call.1']
    #allocation7 [shape = 'u8[16384]{0}', space=vmem, size = 0x4000, scoped, tag = 'input window, operand 2, single buffered']
    #allocation8 [shape = 'u8[512]{0}', space=vmem, size = 0x400, scoped, tag = 'input window, operand 3, single buffered']
    #allocation9 [shape = 's32[1]{0}', space=sflag, size = 0x4, scoped, tag = 'scoped memory for tpu_custom_call.1']
    #allocation10 [shape = 'u8[512]{0}', space=vmem, size = 0x400, scoped, tag = 'input window, operand 4, single buffered']
    #allocation11 [shape = 'u8[8192]{0}', space=vmem, size = 0x2000, scoped, tag = 'input window, operand 5, single buffered']
    #allocation12 [shape = 's32[1]{0}', space=sflag, size = 0x4, scoped, tag = 'scoped memory for tpu_custom_call.1']
    #allocation13 [shape = 'u8[8192]{0}', space=vmem, size = 0x2000, scoped, tag = 'output window, operand 0, single buffered']
    %11 = vsyncpa [#allocation3], 0
    %12 = vsyncpa [#allocation6], 0
    %13 = vsyncpa [#allocation9], 0
    %14 = vsyncpa [#allocation12], 0
    %15 = vsyncpa [#allocation4], 0
    // Predicated region
    $region2: #{tpu_custom_call.1} parent=1 // pred_check
      _
    $region3: #{tpu_custom_call.1} parent=1 // pred_check_branch
      %17 = sbr.rel (0) target = $region5
    $region4: #{tpu_custom_call.1} parent=1 // pred_region
      %s19 = ssub.s32 256, 256
      %20 = vsyncadd [#allocation3], %s19
      %s21 = sshll.u32 [#allocation2], 4
      %s22 = int_to_ptr.vmem [resolvable:$true] %s21
      %27 = dma.hbm_to_vmem [thread:$0]  %s0, 256, %s22, [#allocation3], 128, 128, 8
    $region5: #{tpu_custom_call.1} parent=1 // pred_fallthru
      _
    // Predicated region
    $region6: #{tpu_custom_call.1} parent=1 // pred_check
      _
    $region7: #{tpu_custom_call.1} parent=1 // pred_check_branch
      %29 = sbr.rel (0) target = $region9
    $region8: #{tpu_custom_call.1} parent=1 // pred_region
      %s31 = ssub.s32 512, 512
      %32 = vsyncadd [#allocation6], %s31
      %s33 = sshll.u32 [#allocation5], 4
      %s34 = int_to_ptr.vmem [resolvable:$true] %s33
      %39 = dma.hbm_to_vmem [thread:$0]  %s1, 512, %s34, [#allocation6], 128, 128, 8
    $region9: #{tpu_custom_call.1} parent=1 // pred_fallthru
      _
    // Predicated region
    $region10: #{tpu_custom_call.1} parent=1 // pred_check
      _
    $region11: #{tpu_custom_call.1} parent=1 // pred_check_branch
      %41 = sbr.rel (0) target = $region13
    $region12: #{tpu_custom_call.1} parent=1 // pred_region
      %s43 = ssub.s32 512, 512
      %44 = vsyncadd [#allocation6], %s43
      %s45 = sshll.u32 [#allocation7], 4
      %s46 = int_to_ptr.vmem [resolvable:$true] %s45
      %51 = dma.hbm_to_vmem [thread:$0]  %s2, 512, %s46, [#allocation6], 128, 128, 8
    $region13: #{tpu_custom_call.1} parent=1 // pred_fallthru
      _
    // Predicated region
    $region14: #{tpu_custom_call.1} parent=1 // pred_check
      _
    $region15: #{tpu_custom_call.1} parent=1 // pred_check_branch
      %53 = sbr.rel (0) target = $region17
    $region16: #{tpu_custom_call.1} parent=1 // pred_region
      %s55 = ssub.s32 16, 16
      %56 = vsyncadd [#allocation9], %s55
      %s58 = sshll.u32 [#allocation8], 4
      %s59 = int_to_ptr.vmem [resolvable:$true] %s58
      %61 = dma.hbm_to_vmem [thread:$0]  %s3, 16, %s59, [#allocation9]
    $region17: #{tpu_custom_call.1} parent=1 // pred_fallthru
      _
    // Predicated region
    $region18: #{tpu_custom_call.1} parent=1 // pred_check
      _
    $region19: #{tpu_custom_call.1} parent=1 // pred_check_branch
      %63 = sbr.rel (0) target = $region21
    $region20: #{tpu_custom_call.1} parent=1 // pred_region
      %s65 = ssub.s32 16, 16
      %66 = vsyncadd [#allocation9], %s65
      %s68 = sshll.u32 [#allocation10], 4
      %s69 = int_to_ptr.vmem [resolvable:$true] %s68
      %71 = dma.hbm_to_vmem [thread:$0]  %s4, 16, %s69, [#allocation9]
    $region21: #{tpu_custom_call.1} parent=1 // pred_fallthru
      _
    // Predicated region
    $region22: #{tpu_custom_call.1} parent=1 // pred_check
      _
    $region23: #{tpu_custom_call.1} parent=1 // pred_check_branch
      %73 = sbr.rel (0) target = $region25
    $region24: #{tpu_custom_call.1} parent=1 // pred_region
      %s75 = ssub.s32 256, 256
      %76 = vsyncadd [#allocation12], %s75
      %s77 = sshll.u32 [#allocation11], 4
      %s78 = int_to_ptr.vmem [resolvable:$true] %s77
      %83 = dma.hbm_to_vmem [thread:$0]  %s5, 256, %s78, [#allocation12], 128, 128, 8
    $region25: #{tpu_custom_call.1} parent=1 // pred_fallthru
      _
    // Predicated region
    $region26: #{tpu_custom_call.1} parent=1 // pred_check
      _
    $region27: #{tpu_custom_call.1} parent=1 // pred_check_branch
      %85 = sbr.rel (0) target = $region29
    $region28: #{tpu_custom_call.1} parent=1 // pred_region
      %86 = dma.done [#allocation3], 256
    $region29: #{tpu_custom_call.1} parent=1 // pred_fallthru
      _
    // Predicated region
    $region30: #{tpu_custom_call.1} parent=1 // pred_check
      _
    $region31: #{tpu_custom_call.1} parent=1 // pred_check_branch
      %88 = sbr.rel (0) target = $region33
    $region32: #{tpu_custom_call.1} parent=1 // pred_region
      %89 = dma.done [#allocation6], 512
    $region33: #{tpu_custom_call.1} parent=1 // pred_fallthru
      _
    // Predicated region
    $region34: #{tpu_custom_call.1} parent=1 // pred_check
      _
    $region35: #{tpu_custom_call.1} parent=1 // pred_check_branch
      %91 = sbr.rel (0) target = $region37
    $region36: #{tpu_custom_call.1} parent=1 // pred_region
      %92 = dma.done [#allocation6], 512
    $region37: #{tpu_custom_call.1} parent=1 // pred_fallthru
      _
    // Predicated region
    $region38: #{tpu_custom_call.1} parent=1 // pred_check
      _
    $region39: #{tpu_custom_call.1} parent=1 // pred_check_branch
      %94 = sbr.rel (0) target = $region41
    $region40: #{tpu_custom_call.1} parent=1 // pred_region
      %95 = dma.done [#allocation9], 16
    $region41: #{tpu_custom_call.1} parent=1 // pred_fallthru
      _
    // Predicated region
    $region42: #{tpu_custom_call.1} parent=1 // pred_check
      _
    $region43: #{tpu_custom_call.1} parent=1 // pred_check_branch
      %97 = sbr.rel (0) target = $region45
    $region44: #{tpu_custom_call.1} parent=1 // pred_region
      %98 = dma.done [#allocation9], 16
    $region45: #{tpu_custom_call.1} parent=1 // pred_fallthru
      _
    // Predicated region
    $region46: #{tpu_custom_call.1} parent=1 // pred_check
      _
    $region47: #{tpu_custom_call.1} parent=1 // pred_check_branch
      %100 = sbr.rel (0) target = $region49
    $region48: #{tpu_custom_call.1} parent=1 // pred_region
      %101 = dma.done [#allocation12], 256
    $region49: #{tpu_custom_call.1} parent=1 // pred_fallthru
      _
    %v102 = vld [vmem:[#allocation2] sm:$0xff]
    %v103 = vld [vmem:[#allocation2 + $0x8] sm:$0xff]
    %v104 = vld [vmem:[#allocation5] sm:$0xff]
    %v105 = vld [vmem:[#allocation5 + $0x8] sm:$0xff]
    %v106 = vld [vmem:[#allocation5 + $0x10] sm:$0xff]
    %v107 = vld [vmem:[#allocation5 + $0x18] sm:$0xff]
    %v108 = vld [vmem:[#allocation8] sm:$0x1]
    %v110 = vlaneseq
    %v111 = vshrl.u32 %v110, 7
    %v112 = vsub.s32 0, %v111
    %v113 = vrot.slane %v108, %v112
    %vm115 = vcmask 261120
    %v117 = vsel %vm115, %v102, 0
    %v120 = vsel %vm115, %v103, 0
    %122 = vmatprep.subr.mxu0 0.0
    %123 = vmatpush1.msra.mxu0 %v104
    %124 = vmatprep.subr.mxu0 0.0
    %125 = vmatpush1.msra.mxu0 %v105
    %126 = vmatprep.subr.mxu0 0.0
    %127 = vmatpush1.msra.mxu0 %v106
    %128 = vmatprep.subr.mxu0 0.0
    %129 = vmatpush1.msra.mxu0 %v107
    %130 = vmatprep.subr.mxu0 0.0
    %131 = vmatpush1.msra.mxu0 0.0
    %132 = vmatprep.subr.mxu0 0.0
    %133 = vmatpush1.msra.mxu0 0.0
    %134 = vmatprep.subr.mxu0 0.0
    %135 = vmatpush1.msra.mxu0 0.0
    %136 = vmatprep.subr.mxu0 0.0
    %137 = vmatpush1.msra.mxu0 0.0
    %138 = vmatprep.subr.mxu0 0.0
    %139 = vmatpush1.msra.mxu0 0.0
    %140 = vmatprep.subr.mxu0 0.0
    %141 = vmatpush1.msra.mxu0 0.0
    %142 = vmatprep.subr.mxu0 0.0
    %143 = vmatpush1.msra.mxu0 0.0
    %144 = vmatprep.subr.mxu0 0.0
    %145 = vmatpush1.msra.mxu0 0.0
    %146 = vmatprep.subr.mxu0 0.0
    %147 = vmatpush1.msra.mxu0 0.0
    %148 = vmatprep.subr.mxu0 0.0
    %149 = vmatpush1.msra.mxu0 0.0
    %150 = vmatprep.subr.mxu0 0.0
    %151 = vmatpush1.msra.mxu0 0.0
    %152 = vmatprep.subr.mxu0 0.0
    %153 = vmatpush1.msra.mxu0 0.0
    %154 = vmatprep.subr.mxu0 0.0
    %155 = vmatpush1.msra.mxu0 0.0
    %156 = vmatprep.subr.mxu0 0.0
    %157 = vmatpush1.msra.mxu0 0.0
    %158 = vmatprep.subr.mxu0 0.0
    %159 = vmatpush1.msra.mxu0 0.0
    %160 = vmatprep.subr.mxu0 0.0
    %161 = vmatpush1.msra.mxu0 0.0
    %162 = vmatprep.subr.mxu0 0.0
    %163 = vmatpush1.msra.mxu0 0.0
    %164 = vmatprep.subr.mxu0 0.0
    %165 = vmatpush1.msra.mxu0 0.0
    %166 = vmatprep.subr.mxu0 0.0
    %167 = vmatpush1.msra.mxu0 0.0
    %168 = vmatprep.subr.mxu0 0.0
    %169 = vmatpush1.msra.mxu0 0.0
    %170 = vmatprep.subr.mxu0 0.0
    %171 = vmatpush1.msra.mxu0 0.0
    %172 = vmatprep.subr.mxu0 0.0
    %173 = vmatpush1.msra.mxu0 0.0
    %174 = vmatprep.subr.mxu0 0.0
    %175 = vmatpush1.msra.mxu0 0.0
    %176 = vmatprep.subr.mxu0 0.0
    %177 = vmatpush1.msra.mxu0 0.0
    %178 = vmatprep.subr.mxu0 0.0
    %179 = vmatpush1.msra.mxu0 0.0
    %180 = vmatprep.subr.mxu0 0.0
    %181 = vmatpush1.msra.mxu0 0.0
    %182 = vmatprep.subr.mxu0 0.0
    %183 = vmatpush1.msra.mxu0 0.0
    %184 = vmatprep.subr.mxu0 0.0
    %185 = vmatpush1.msra.mxu0 0.0
    %186 = vmatprep.mubr.f32.mxu0 0.0
    %187 = vmatmul.mubr.f32.gmra.mrb[0].mxu0 %v117
    %v188 = vpop.f32.mrb[0].mxu0
    %v189 = vadd.f32 %v113, %v188
    %v190 = vpop.f32.mrb[0].mxu0
    %191 = vmatprep.mubr.f32.mxu0 0.0
    %192 = vmatmul.mubr.f32.gmra.mrb[0].mxu0 %v120
    %v193 = vpop.f32.mrb[0].mxu0
    %v194 = vadd.f32 %v113, %v193
    %v195 = vpop.f32.mrb[0].mxu0
    %196 = vdwg.mxu0
    %v197 = vmul.f32 %v102, %v102
    %v198 = vmul.f32 %v103, %v103
    %v199 = vld [vmem:[#allocation7] sm:$0xff]
    %v200 = vld [vmem:[#allocation7 + $0x8] sm:$0xff]
    %v201 = vld [vmem:[#allocation7 + $0x10] sm:$0xff]
    %v202 = vld [vmem:[#allocation7 + $0x18] sm:$0xff]
    %v203 = vld [vmem:[#allocation10] sm:$0x1]
    %v205 = vlaneseq
    %v206 = vshrl.u32 %v205, 7
    %v207 = vsub.s32 0, %v206
    %v208 = vrot.slane %v203, %v207
    %v211 = vsel %vm115, %v197, 0
    %v214 = vsel %vm115, %v198, 0
    %216 = vmatprep.subr.mxu0 0.0
    %217 = vmatpush1.msra.mxu0 %v199
    %218 = vmatprep.subr.mxu0 0.0
    %219 = vmatpush1.msra.mxu0 %v200
    %220 = vmatprep.subr.mxu0 0.0
    %221 = vmatpush1.msra.mxu0 %v201
    %222 = vmatprep.subr.mxu0 0.0
    %223 = vmatpush1.msra.mxu0 %v202
    %224 = vmatprep.subr.mxu0 0.0
    %225 = vmatpush1.msra.mxu0 0.0
    %226 = vmatprep.subr.mxu0 0.0
    %227 = vmatpush1.msra.mxu0 0.0
    %228 = vmatprep.subr.mxu0 0.0
    %229 = vmatpush1.msra.mxu0 0.0
    %230 = vmatprep.subr.mxu0 0.0
    %231 = vmatpush1.msra.mxu0 0.0
    %232 = vmatprep.subr.mxu0 0.0
    %233 = vmatpush1.msra.mxu0 0.0
    %234 = vmatprep.subr.mxu0 0.0
    %235 = vmatpush1.msra.mxu0 0.0
    %236 = vmatprep.subr.mxu0 0.0
    %237 = vmatpush1.msra.mxu0 0.0
    %238 = vmatprep.subr.mxu0 0.0
    %239 = vmatpush1.msra.mxu0 0.0
    %240 = vmatprep.subr.mxu0 0.0
    %241 = vmatpush1.msra.mxu0 0.0
    %242 = vmatprep.subr.mxu0 0.0
    %243 = vmatpush1.msra.mxu0 0.0
    %244 = vmatprep.subr.mxu0 0.0
    %245 = vmatpush1.msra.mxu0 0.0
    %246 = vmatprep.subr.mxu0 0.0
    %247 = vmatpush1.msra.mxu0 0.0
    %248 = vmatprep.subr.mxu0 0.0
    %249 = vmatpush1.msra.mxu0 0.0
    %250 = vmatprep.subr.mxu0 0.0
    %251 = vmatpush1.msra.mxu0 0.0
    %252 = vmatprep.subr.mxu0 0.0
    %253 = vmatpush1.msra.mxu0 0.0
    %254 = vmatprep.subr.mxu0 0.0
    %255 = vmatpush1.msra.mxu0 0.0
    %256 = vmatprep.subr.mxu0 0.0
    %257 = vmatpush1.msra.mxu0 0.0
    %258 = vmatprep.subr.mxu0 0.0
    %259 = vmatpush1.msra.mxu0 0.0
    %260 = vmatprep.subr.mxu0 0.0
    %261 = vmatpush1.msra.mxu0 0.0
    %262 = vmatprep.subr.mxu0 0.0
    %263 = vmatpush1.msra.mxu0 0.0
    %264 = vmatprep.subr.mxu0 0.0
    %265 = vmatpush1.msra.mxu0 0.0
    %266 = vmatprep.subr.mxu0 0.0
    %267 = vmatpush1.msra.mxu0 0.0
    %268 = vmatprep.subr.mxu0 0.0
    %269 = vmatpush1.msra.mxu0 0.0
    %270 = vmatprep.subr.mxu0 0.0
    %271 = vmatpush1.msra.mxu0 0.0
    %272 = vmatprep.subr.mxu0 0.0
    %273 = vmatpush1.msra.mxu0 0.0
    %274 = vmatprep.subr.mxu0 0.0
    %275 = vmatpush1.msra.mxu0 0.0
    %276 = vmatprep.subr.mxu0 0.0
    %277 = vmatpush1.msra.mxu0 0.0
    %278 = vmatprep.subr.mxu0 0.0
    %279 = vmatpush1.msra.mxu0 0.0
    %280 = vmatprep.mubr.f32.mxu0 0.0
    %281 = vmatmul.mubr.f32.gmra.mrb[0].mxu0 %v211
    %v282 = vpop.f32.mrb[0].mxu0
    %v283 = vadd.f32 %v208, %v282
    %v284 = vpop.f32.mrb[0].mxu0
    %285 = vmatprep.mubr.f32.mxu0 0.0
    %286 = vmatmul.mubr.f32.gmra.mrb[0].mxu0 %v214
    %v287 = vpop.f32.mrb[0].mxu0
    %v288 = vadd.f32 %v208, %v287
    %v289 = vpop.f32.mrb[0].mxu0
    %290 = vdwg.mxu0
    %v291 = vmax.f32 %v283, 0.0
    %v292 = vmax.f32 %v288, 0.0
    %v293 = vld [vmem:[#allocation11] sm:$0xff]
    %v294 = vld [vmem:[#allocation11 + $0x8] sm:$0xff]
    %v295 = vrsqrt.pop %v291
    %v296 = vmul.f32 %v291, %v295
    %vm297 = vcmp.eq.f32.partialorder %v291, inf
    %v298 = vsel %vm297, %v291, %v296
    %vm299 = vcmp.eq.f32.partialorder %v291, 0.0
    %v300 = vand.u32 %v291, 2147483648
    %v301 = vsel %vm299, %v300, %v298
    %v302 = vrsqrt.pop %v292
    %v303 = vmul.f32 %v292, %v302
    %vm304 = vcmp.eq.f32.partialorder %v292, inf
    %v305 = vsel %vm304, %v292, %v303
    %vm306 = vcmp.eq.f32.partialorder %v292, 0.0
    %v307 = vand.u32 %v292, 2147483648
    %v308 = vsel %vm306, %v307, %v305
    %v309 = vmul.f32 %v293, %v301
    %v310 = vmul.f32 %v294, %v308
    %v311 = vadd.f32 %v189, %v309
    %v312 = vadd.f32 %v194, %v310
    %313 = vst [vmem:[#allocation13] sm:$0xff] %v311
    %314 = vst [vmem:[#allocation13 + $0x8] sm:$0xff] %v312
    // Predicated region
    $region50: #{tpu_custom_call.1} parent=1 // pred_check
      _
    $region51: #{tpu_custom_call.1} parent=1 // pred_check_branch
      %316 = sbr.rel (0) target = $region53
    $region52: #{tpu_custom_call.1} parent=1 // pred_region
      %s318 = ssub.s32 256, 256
      %319 = vsyncadd [#allocation4], %s318
      %s320 = sshll.u32 [#allocation13], 4
      %s321 = int_to_ptr.vmem [resolvable:$true] %s320
      %326 = dma.vmem_to_hbm [thread:$0]  %s321, 256, %s6, [#allocation4], 128, 128, 8
    $region53: #{tpu_custom_call.1} parent=1 // pred_fallthru
      _
    // Predicated region
    $region54: #{tpu_custom_call.1} parent=1 // pred_check
      _
    $region55: #{tpu_custom_call.1} parent=1 // pred_check_branch
      %328 = sbr.rel (0) target = $region57
    $region56: #{tpu_custom_call.1} parent=1 // pred_region
      %329 = dma.done [#allocation4], 256
    $region57: #{tpu_custom_call.1} parent=1 // pred_fallthru
      _
    %330 = vsyncpa [#allocation3], 1
    %331 = vsyncpa [#allocation6], 1
    %332 = vsyncpa [#allocation9], 1
    %333 = vsyncpa [#allocation12], 1
    %334 = vsyncpa [#allocation4], 1

</llo_original>
